<compile_context>
chip_gen: v5e
topology: v5e:2x2
jax: 0.10.0
libtpu: 0.0.40
codegen_flags: <defaults>
</compile_context>

<pallas_src>
import jax
import jax.numpy as jnp
from jax.experimental import pallas as pl
from jax.experimental.pallas import tpu as pltpu


def _round_up(x, m):
    return (x + m - 1) // m * m


def _leaky_relu(x, slope=0.01):
    return jnp.where(x > 0, x, slope * x)


def moe_forward(x, params, *, tm=None, tk=None):
    """x: (B, D) flattened image (D = C*H*W).  Returns (B, O) combined output."""
    w1, b1, w2, b2, w3, b3, w4, b4, we, be = params
    B, D = x.shape
    E, D2, O = we.shape
    assert D2 == D
    EO = E * O
    OP = _round_up(O, 128)                       # lane-dense output width
    H1, H2, H3 = w1.shape[1], w2.shape[1], w3.shape[1]
    FW = _round_up(H1 + EO, 128)                 # fused streamed-weight width
    cdt = w1.dtype                               # MXU compute dtype (f32 or bf16)

    # ---- tile sizes --------------------------------------------------------
    if tm is None:
        if B >= 512:
            tm = 512
        elif B >= 128:
            tm = 128
        else:
            tm = _round_up(B, 8)
    if tk is None:
        tk = 8192 if D >= 8192 else _round_up(D, 128)
    B_pad = _round_up(B, tm)
    D_pad = _round_up(D, tk)
    n_m = B_pad // tm
    n_k = D_pad // tk

    # ---- host-side layout prep (zero padding along batch / contraction) ----
    xp = jnp.zeros((B_pad, D_pad), cdt).at[:B, :D].set(x.astype(cdt))
    # fused streamed weight: [ w1 | We2d | zero-pad ] along the lane axis
    we2d = jnp.transpose(we, (1, 0, 2)).reshape(D, EO)       # (E,D,O) -> (D, E*O)
    wf = (jnp.zeros((D_pad, FW), cdt)
          .at[:D, :H1].set(w1)
          .at[:D, H1:H1 + EO].set(we2d.astype(cdt)))
    be2d = be.reshape(1, EO)
    # 0/1 helper matrices for the gate-expand / expert-fold matmuls (f32, exact)
    gexp = (jnp.arange(EO)[None, :] // O == jnp.arange(E)[:, None]).astype(jnp.float32)
    fold = (jnp.arange(EO)[:, None] % O == jnp.arange(OP)[None, :]).astype(jnp.float32)

    # ---- kernel (closure over the static dims) ------------------------------
    def moe_kernel(x_ref, wf_ref, b1_ref, w2_ref, b2_ref, w3_ref, b3_ref,
                   w4_ref, b4_ref, be_ref, gexp_ref, fold_ref,
                   out_ref, acc_ref):
        k = pl.program_id(1)

        @pl.when(k == 0)
        def _init():
            acc_ref[...] = jnp.zeros_like(acc_ref)

        # single fused, lane-dense streamed matmul per K step
        acc_ref[...] += jnp.dot(x_ref[...], wf_ref[...],
                                preferred_element_type=jnp.float32)

        @pl.when(k == pl.num_programs(1) - 1)
        def _finalize():
            f32 = jnp.float32
            acc = acc_ref[...]
            # ---- gating MLP (dropout = identity in eval mode) --------------
            h = jnp.maximum(acc[:, :H1] + b1_ref[...].astype(f32), 0.0)
            h = _leaky_relu(jnp.dot(h.astype(cdt), w2_ref[...],
                                    preferred_element_type=f32)
                            + b2_ref[...].astype(f32))
            h = _leaky_relu(jnp.dot(h.astype(cdt), w3_ref[...],
                                    preferred_element_type=f32)
                            + b3_ref[...].astype(f32))
            logits = (jnp.dot(h.astype(cdt), w4_ref[...],
                              preferred_element_type=f32)
                      + b4_ref[...].astype(f32))
            # softmax over the expert axis (exact reciprocal: runs once)
            m = jnp.max(logits, axis=1, keepdims=True)
            ex = jnp.exp(logits - m)
            gates = ex * pl.reciprocal(jnp.sum(ex, axis=1, keepdims=True),
                                       approx=False)
            # ---- gate-weighted expert combine ------------------------------
            # gexp (E, E*O) 0/1: one gate per expert-output lane.
            # fold (E*O, OP) 0/1: sum over experts into a lane-dense block.
            ge = jnp.dot(gates, gexp_ref[...], preferred_element_type=f32)
            weighted = (acc[:, H1:H1 + EO] + be_ref[...].astype(f32)) * ge
            out_ref[...] = jnp.dot(weighted, fold_ref[...],
                                   preferred_element_type=f32).astype(out_ref.dtype)

    def const(shape):                            # VMEM-resident across the grid
        return pl.BlockSpec(shape, lambda i, k: (0, 0))

    grid_spec = pltpu.PrefetchScalarGridSpec(
        num_scalar_prefetch=0,
        grid=(n_m, n_k),
        in_specs=[
            pl.BlockSpec((tm, tk), lambda i, k: (i, k)),     # x       (streamed)
            pl.BlockSpec((tk, FW), lambda i, k: (k, 0)),     # fused W (streamed)
            const((1, H1)),                                  # b1
            const((H1, H2)),                                 # w2      (resident)
            const((1, H2)),                                  # b2
            const((H2, H3)),                                 # w3
            const((1, H3)),                                  # b3
            const((H3, E)),                                  # w4
            const((1, E)),                                   # b4
            const((1, EO)),                                  # fused expert bias
            const((E, EO)),                                  # gate expand matrix
            const((EO, OP)),                                 # expert fold matrix
        ],
        out_specs=pl.BlockSpec((tm, OP), lambda i, k: (i, 0)),
        scratch_shapes=[
            pltpu.VMEM((tm, FW), jnp.float32),               # fused accumulator
        ],
    )

    # ---- footprint-derived VMEM limit (double-buffered streams + resident) --
    isz = jnp.dtype(cdt).itemsize
    streamed = 2 * (tm * tk + tk * FW) * isz
    resident = 2 * ((H1 + H1 * H2 + H2 + H2 * H3 + H3 + H3 * E + E + EO) * isz
                    + (E * EO + EO * OP) * 4)
    acc_bytes = tm * FW * 4
    out_bytes = 2 * tm * OP * 4
    vmem_bytes = int((streamed + resident + acc_bytes + out_bytes) * 1.3)
    vmem_bytes = max(16 * 1024 * 1024, min(vmem_bytes, 112 * 1024 * 1024))

    out_padded = pl.pallas_call(
        moe_kernel,
        out_shape=jax.ShapeDtypeStruct((B_pad, OP), jnp.float32),
        grid_spec=grid_spec,
        compiler_params=pltpu.CompilerParams(
            dimension_semantics=("parallel", "arbitrary"),
            vmem_limit_bytes=vmem_bytes),
    )(xp, wf, b1, w2, b2, w3, b3, w4, b4, be2d, gexp, fold)

    return out_padded[:B, :O]


def init_params(key, D, E, O, dtype=jnp.float32):
    ks = jax.random.split(key, 10)
    s = 0.05

    def rnd(k, shape):
        return (jax.random.normal(k, shape, jnp.float32) * s).astype(dtype)

    w1, b1 = rnd(ks[0], (D, 128)), rnd(ks[1], (1, 128))
    w2, b2 = rnd(ks[2], (128, 256)), rnd(ks[3], (1, 256))
    w3, b3 = rnd(ks[4], (256, 128)), rnd(ks[5], (1, 128))
    w4, b4 = rnd(ks[6], (128, E)), rnd(ks[7], (1, E))
    we = rnd(ks[8], (E, D, O))               # stacked (linear) expert weights
    be = rnd(ks[9], (E, O))
    return (w1, b1, w2, b2, w3, b3, w4, b4, we, be)


def moe_reference(x, params):
    """Plain-JAX reference mirroring the PyTorch forward (eval mode), f32."""
    w1, b1, w2, b2, w3, b3, w4, b4, we, be = [p.astype(jnp.float32) for p in params]
    h = jnp.maximum(x @ w1 + b1, 0.0)
    h = _leaky_relu(h @ w2 + b2)
    h = _leaky_relu(h @ w3 + b3)
    gates = jax.nn.softmax(h @ w4 + b4, axis=1)                       # (B, E)
    outs = jnp.einsum('bd,edo->boe', x, we) + jnp.transpose(be)[None]  # (B, O, E)
    return jnp.sum(outs * gates[:, None, :], axis=2)


if __name__ == "__main__":
    key = jax.random.PRNGKey(0)
    # Small shapes consistent with the module: batch=2, channels=3, spatial=8x8.
    B, C, H, W = 2, 3, 8, 8
    D = C * H * W            # gating / expert input dim (stands in for 224*224*3)
    E = 4                    # num_experts
    O = 16                   # expert output dim

    kx, kp = jax.random.split(key)
    x_img = jax.random.normal(kx, (B, C, H, W), jnp.float32)    # NCHW
    x = x_img.reshape(B, -1)                                    # flatten, as in forward

    # ---- f32 weights: tight-ish check against the plain-JAX reference -----
    params = init_params(kp, D, E, O, dtype=jnp.float32)
    out = moe_forward(x, params)
    jax.block_until_ready(out)
    ref = moe_reference(x, params)
    assert out.shape == ref.shape
    assert jnp.allclose(out, ref, atol=1e-2, rtol=1e-2), (
        f"mismatch vs reference: max |diff| = {float(jnp.max(jnp.abs(out - ref)))}")

    # ---- bf16 weight/x streaming path (halves HBM bytes, f32 accumulation) --
    params_bf16 = jax.tree.map(lambda p: p.astype(jnp.bfloat16), params)
    out_bf16 = moe_forward(x, params_bf16)
    jax.block_until_ready(out_bf16)
    assert jnp.all(jnp.isfinite(out_bf16))
    assert jnp.allclose(out_bf16, ref, atol=1e-1, rtol=1e-1)

    print("KERNEL_OK")
</pallas_src>

<mosaic_0001>
module attributes {stable_mosaic.version = 11 : i64} {
  func.func @moe_kernel(%arg0: i32, %arg1: i32, %arg2: memref<8x256xf32, #tpu.memory_space<vmem>>, %arg3: memref<256x256xf32, #tpu.memory_space<vmem>>, %arg4: memref<1x128xf32, #tpu.memory_space<vmem>>, %arg5: memref<128x256xf32, #tpu.memory_space<vmem>>, %arg6: memref<1x256xf32, #tpu.memory_space<vmem>>, %arg7: memref<256x128xf32, #tpu.memory_space<vmem>>, %arg8: memref<1x128xf32, #tpu.memory_space<vmem>>, %arg9: memref<128x4xf32, #tpu.memory_space<vmem>>, %arg10: memref<1x4xf32, #tpu.memory_space<vmem>>, %arg11: memref<1x64xf32, #tpu.memory_space<vmem>>, %arg12: memref<4x64xf32, #tpu.memory_space<vmem>>, %arg13: memref<64x128xf32, #tpu.memory_space<vmem>>, %arg14: memref<8x128xf32, #tpu.memory_space<vmem>>, %arg15: memref<8x256xf32, #tpu.memory_space<vmem>>) attributes {dimension_semantics = [#tpu.dimension_semantics<parallel>, #tpu.dimension_semantics<arbitrary>], iteration_bounds = array<i64: 1, 1>, scalar_prefetch = 0 : i64, scratch_operands = 1 : i64, tpu.core_type = #tpu.core_type<tc>, window_params = [{transform_indices = @transform_0, window_bounds = array<i64: 8, 256>}, {transform_indices = @transform_1, window_bounds = array<i64: 256, 256>}, {pipeline_mode = #tpu.pipeline_mode<synchronous>, transform_indices = @transform_2, window_bounds = array<i64: 1, 128>}, {pipeline_mode = #tpu.pipeline_mode<synchronous>, transform_indices = @transform_3, window_bounds = array<i64: 128, 256>}, {pipeline_mode = #tpu.pipeline_mode<synchronous>, transform_indices = @transform_4, window_bounds = array<i64: 1, 256>}, {pipeline_mode = #tpu.pipeline_mode<synchronous>, transform_indices = @transform_5, window_bounds = array<i64: 256, 128>}, {pipeline_mode = #tpu.pipeline_mode<synchronous>, transform_indices = @transform_6, window_bounds = array<i64: 1, 128>}, {pipeline_mode = #tpu.pipeline_mode<synchronous>, transform_indices = @transform_7, window_bounds = array<i64: 128, 4>}, {pipeline_mode = #tpu.pipeline_mode<synchronous>, transform_indices = @transform_8, window_bounds = array<i64: 1, 4>}, {pipeline_mode = #tpu.pipeline_mode<synchronous>, transform_indices = @transform_9, window_bounds = array<i64: 1, 64>}, {pipeline_mode = #tpu.pipeline_mode<synchronous>, transform_indices = @transform_10, window_bounds = array<i64: 4, 64>}, {pipeline_mode = #tpu.pipeline_mode<synchronous>, transform_indices = @transform_11, window_bounds = array<i64: 64, 128>}, {transform_indices = @transform_12, window_bounds = array<i64: 8, 128>}]} {
    %c0_i32 = arith.constant 0 : i32
    %0 = arith.cmpi eq, %arg1, %c0_i32 : i32
    %1 = arith.extui %0 : i1 to i32
    %c0_i32_0 = arith.constant 0 : i32
    %2 = arith.cmpi ne, %1, %c0_i32_0 : i32
    scf.if %2 {
      %cst_10 = arith.constant 0.000000e+00 : f32
      %12 = vector.broadcast %cst_10 : f32 to vector<8x256xf32>
      %c0_11 = arith.constant 0 : index
      %c0_12 = arith.constant 0 : index
      %13 = vector.load %arg15[%c0_11, %c0_12] : memref<8x256xf32, #tpu.memory_space<vmem>>, vector<8x256xf32>
      tpu.vector_store %arg15[%c0_11, %c0_12], %12 {strides = array<i32>} : memref<8x256xf32, #tpu.memory_space<vmem>>, vector<8x256xf32>,
    } else {
    }
    %c0 = arith.constant 0 : index
    %c0_1 = arith.constant 0 : index
    %3 = vector.load %arg15[%c0, %c0_1] : memref<8x256xf32, #tpu.memory_space<vmem>>, vector<8x256xf32>
    %c0_2 = arith.constant 0 : index
    %c0_3 = arith.constant 0 : index
    %4 = vector.load %arg2[%c0_2, %c0_3] : memref<8x256xf32, #tpu.memory_space<vmem>>, vector<8x256xf32>
    %c0_4 = arith.constant 0 : index
    %c0_5 = arith.constant 0 : index
    %5 = vector.load %arg3[%c0_4, %c0_5] : memref<256x256xf32, #tpu.memory_space<vmem>>, vector<256x256xf32>
    %cst = arith.constant dense<0.000000e+00> : vector<8x256xf32>
    %6 = tpu.matmul %4, %5, %cst {dimension_numbers = #tpu.dot_dimension_numbers<[1], [0], [0], [1], [0, 0, 1, 1], [], []>} : vector<8x256xf32>, vector<256x256xf32>, vector<8x256xf32> -> vector<8x256xf32>
    %7 = arith.addf %3, %6 : vector<8x256xf32>
    %c0_6 = arith.constant 0 : index
    %c0_7 = arith.constant 0 : index
    %8 = vector.load %arg15[%c0_6, %c0_7] : memref<8x256xf32, #tpu.memory_space<vmem>>, vector<8x256xf32>
    tpu.vector_store %arg15[%c0_6, %c0_7], %7 {strides = array<i32>} : memref<8x256xf32, #tpu.memory_space<vmem>>, vector<8x256xf32>,
    %c0_i32_8 = arith.constant 0 : i32
    %9 = arith.cmpi eq, %arg1, %c0_i32_8 : i32
    %10 = arith.extui %9 : i1 to i32
    %c0_i32_9 = arith.constant 0 : i32
    %11 = arith.cmpi ne, %10, %c0_i32_9 : i32
    scf.if %11 {
      %c0_10 = arith.constant 0 : index
      %c0_11 = arith.constant 0 : index
      %12 = vector.load %arg15[%c0_10, %c0_11] : memref<8x256xf32, #tpu.memory_space<vmem>>, vector<8x256xf32>
      %13 = vector.extract_strided_slice %12 {offsets = [0, 0], sizes = [8, 128], strides = [1, 1]} : vector<8x256xf32> to vector<8x128xf32>
      %c0_12 = arith.constant 0 : index
      %c0_13 = arith.constant 0 : index
      %14 = vector.load %arg4[%c0_12, %c0_13] : memref<1x128xf32, #tpu.memory_space<vmem>>, vector<1x128xf32>
      %15 = vector.broadcast %14 : vector<1x128xf32> to vector<8x128xf32>
      %16 = arith.addf %13, %15 : vector<8x128xf32>
      %cst_14 = arith.constant 0.000000e+00 : f32
      %17 = vector.broadcast %cst_14 : f32 to vector<8x128xf32>
      %18 = arith.maximumf %16, %17 : vector<8x128xf32>
      %c0_15 = arith.constant 0 : index
      %c0_16 = arith.constant 0 : index
      %19 = vector.load %arg5[%c0_15, %c0_16] : memref<128x256xf32, #tpu.memory_space<vmem>>, vector<128x256xf32>
      %cst_17 = arith.constant dense<0.000000e+00> : vector<8x256xf32>
      %20 = tpu.matmul %18, %19, %cst_17 {dimension_numbers = #tpu.dot_dimension_numbers<[1], [0], [0], [1], [0, 0, 1, 1], [], []>} : vector<8x128xf32>, vector<128x256xf32>, vector<8x256xf32> -> vector<8x256xf32>
      %c0_18 = arith.constant 0 : index
      %c0_19 = arith.constant 0 : index
      %21 = vector.load %arg6[%c0_18, %c0_19] : memref<1x256xf32, #tpu.memory_space<vmem>>, vector<1x256xf32>
      %22 = vector.broadcast %21 : vector<1x256xf32> to vector<8x256xf32>
      %23 = arith.addf %20, %22 : vector<8x256xf32>
      %cst_20 = arith.constant 0.000000e+00 : f32
      %24 = vector.broadcast %cst_20 : f32 to vector<8x256xf32>
      %25 = arith.cmpf ogt, %23, %24 : vector<8x256xf32>
      %cst_21 = arith.constant 0.00999999977 : f32
      %26 = vector.broadcast %cst_21 : f32 to vector<8x256xf32>
      %27 = arith.mulf %26, %23 : vector<8x256xf32>
      %28 = arith.select %25, %23, %27 : vector<8x256xi1>, vector<8x256xf32>
      %c0_22 = arith.constant 0 : index
      %c0_23 = arith.constant 0 : index
      %29 = vector.load %arg7[%c0_22, %c0_23] : memref<256x128xf32, #tpu.memory_space<vmem>>, vector<256x128xf32>
      %cst_24 = arith.constant dense<0.000000e+00> : vector<8x128xf32>
      %30 = tpu.matmul %28, %29, %cst_24 {dimension_numbers = #tpu.dot_dimension_numbers<[1], [0], [0], [1], [0, 0, 1, 1], [], []>} : vector<8x256xf32>, vector<256x128xf32>, vector<8x128xf32> -> vector<8x128xf32>
      %c0_25 = arith.constant 0 : index
      %c0_26 = arith.constant 0 : index
      %31 = vector.load %arg8[%c0_25, %c0_26] : memref<1x128xf32, #tpu.memory_space<vmem>>, vector<1x128xf32>
      %32 = vector.broadcast %31 : vector<1x128xf32> to vector<8x128xf32>
      %33 = arith.addf %30, %32 : vector<8x128xf32>
      %cst_27 = arith.constant 0.000000e+00 : f32
      %34 = vector.broadcast %cst_27 : f32 to vector<8x128xf32>
      %35 = arith.cmpf ogt, %33, %34 : vector<8x128xf32>
      %cst_28 = arith.constant 0.00999999977 : f32
      %36 = vector.broadcast %cst_28 : f32 to vector<8x128xf32>
      %37 = arith.mulf %36, %33 : vector<8x128xf32>
      %38 = arith.select %35, %33, %37 : vector<8x128xi1>, vector<8x128xf32>
      %c0_29 = arith.constant 0 : index
      %c0_30 = arith.constant 0 : index
      %39 = vector.load %arg9[%c0_29, %c0_30] : memref<128x4xf32, #tpu.memory_space<vmem>>, vector<128x4xf32>
      %cst_31 = arith.constant dense<0.000000e+00> : vector<8x4xf32>
      %40 = tpu.matmul %38, %39, %cst_31 {dimension_numbers = #tpu.dot_dimension_numbers<[1], [0], [0], [1], [0, 0, 1, 1], [], []>} : vector<8x128xf32>, vector<128x4xf32>, vector<8x4xf32> -> vector<8x4xf32>
      %c0_32 = arith.constant 0 : index
      %c0_33 = arith.constant 0 : index
      %41 = vector.load %arg10[%c0_32, %c0_33] : memref<1x4xf32, #tpu.memory_space<vmem>>, vector<1x4xf32>
      %42 = vector.broadcast %41 : vector<1x4xf32> to vector<8x4xf32>
      %43 = arith.addf %40, %42 : vector<8x4xf32>
      %cst_34 = arith.constant dense<0xFF800000> : vector<8xf32>
      %44 = vector.multi_reduction <maximumf>, %43, %cst_34 [1] : vector<8x4xf32> to vector<8xf32>
      %45 = vector.shape_cast %44 : vector<8xf32> to vector<8x1xf32>
      %46 = vector.broadcast %45 : vector<8x1xf32> to vector<8x4xf32>
      %47 = arith.subf %43, %46 : vector<8x4xf32>
      %48 = math.exp %47 : vector<8x4xf32>
      %cst_35 = arith.constant dense<0.000000e+00> : vector<8xf32>
      %49 = vector.multi_reduction <add>, %48, %cst_35 [1] : vector<8x4xf32> to vector<8xf32>
      %50 = vector.shape_cast %49 : vector<8xf32> to vector<8x1xf32>
      %51 = tpu.reciprocal %50 : vector<8x1xf32> -> vector<8x1xf32>
      %52 = vector.broadcast %51 : vector<8x1xf32> to vector<8x4xf32>
      %53 = arith.mulf %48, %52 : vector<8x4xf32>
      %c0_36 = arith.constant 0 : index
      %c0_37 = arith.constant 0 : index
      %54 = vector.load %arg12[%c0_36, %c0_37] : memref<4x64xf32, #tpu.memory_space<vmem>>, vector<4x64xf32>
      %cst_38 = arith.constant dense<0.000000e+00> : vector<8x64xf32>
      %55 = tpu.matmul %53, %54, %cst_38 {dimension_numbers = #tpu.dot_dimension_numbers<[1], [0], [0], [1], [0, 0, 1, 1], [], []>} : vector<8x4xf32>, vector<4x64xf32>, vector<8x64xf32> -> vector<8x64xf32>
      %56 = vector.extract_strided_slice %12 {offsets = [0, 128], sizes = [8, 64], strides = [1, 1]} : vector<8x256xf32> to vector<8x64xf32>
      %c0_39 = arith.constant 0 : index
      %c0_40 = arith.constant 0 : index
      %57 = vector.load %arg11[%c0_39, %c0_40] : memref<1x64xf32, #tpu.memory_space<vmem>>, vector<1x64xf32>
      %58 = vector.broadcast %57 : vector<1x64xf32> to vector<8x64xf32>
      %59 = arith.addf %56, %58 : vector<8x64xf32>
      %60 = arith.mulf %59, %55 : vector<8x64xf32>
      %c0_41 = arith.constant 0 : index
      %c0_42 = arith.constant 0 : index
      %61 = vector.load %arg13[%c0_41, %c0_42] : memref<64x128xf32, #tpu.memory_space<vmem>>, vector<64x128xf32>
      %cst_43 = arith.constant dense<0.000000e+00> : vector<8x128xf32>
      %62 = tpu.matmul %60, %61, %cst_43 {dimension_numbers = #tpu.dot_dimension_numbers<[1], [0], [0], [1], [0, 0, 1, 1], [], []>} : vector<8x64xf32>, vector<64x128xf32>, vector<8x128xf32> -> vector<8x128xf32>
      %c0_44 = arith.constant 0 : index
      %c0_45 = arith.constant 0 : index
      %63 = vector.load %arg14[%c0_44, %c0_45] : memref<8x128xf32, #tpu.memory_space<vmem>>, vector<8x128xf32>
      tpu.vector_store %arg14[%c0_44, %c0_45], %62 {strides = array<i32>} : memref<8x128xf32, #tpu.memory_space<vmem>>, vector<8x128xf32>,
    } else {
    }
    return
  }
  func.func @transform_0(%arg0: i32, %arg1: i32) -> (i32, i32) {
    %c0_i32 = arith.constant 0 : i32
    return %arg0, %arg1 : i32, i32
  }
  func.func @transform_1(%arg0: i32, %arg1: i32) -> (i32, i32) {
    %c0_i32 = arith.constant 0 : i32
    %c0_i32_0 = arith.constant 0 : i32
    return %arg1, %c0_i32 : i32, i32
  }
  func.func @transform_2(%arg0: i32, %arg1: i32) -> (i32, i32) {
    %c0_i32 = arith.constant 0 : i32
    %c0_i32_0 = arith.constant 0 : i32
    %c0_i32_1 = arith.constant 0 : i32
    return %c0_i32, %c0_i32_0 : i32, i32
  }
  func.func @transform_3(%arg0: i32, %arg1: i32) -> (i32, i32) {
    %c0_i32 = arith.constant 0 : i32
    %c0_i32_0 = arith.constant 0 : i32
    %c0_i32_1 = arith.constant 0 : i32
    return %c0_i32, %c0_i32_0 : i32, i32
  }
  func.func @transform_4(%arg0: i32, %arg1: i32) -> (i32, i32) {
    %c0_i32 = arith.constant 0 : i32
    %c0_i32_0 = arith.constant 0 : i32
    %c0_i32_1 = arith.constant 0 : i32
    return %c0_i32, %c0_i32_0 : i32, i32
  }
  func.func @transform_5(%arg0: i32, %arg1: i32) -> (i32, i32) {
    %c0_i32 = arith.constant 0 : i32
    %c0_i32_0 = arith.constant 0 : i32
    %c0_i32_1 = arith.constant 0 : i32
    return %c0_i32, %c0_i32_0 : i32, i32
  }
  func.func @transform_6(%arg0: i32, %arg1: i32) -> (i32, i32) {
    %c0_i32 = arith.constant 0 : i32
    %c0_i32_0 = arith.constant 0 : i32
    %c0_i32_1 = arith.constant 0 : i32
    return %c0_i32, %c0_i32_0 : i32, i32
  }
  func.func @transform_7(%arg0: i32, %arg1: i32) -> (i32, i32) {
    %c0_i32 = arith.constant 0 : i32
    %c0_i32_0 = arith.constant 0 : i32
    %c0_i32_1 = arith.constant 0 : i32
    return %c0_i32, %c0_i32_0 : i32, i32
  }
  func.func @transform_8(%arg0: i32, %arg1: i32) -> (i32, i32) {
    %c0_i32 = arith.constant 0 : i32
    %c0_i32_0 = arith.constant 0 : i32
    %c0_i32_1 = arith.constant 0 : i32
    return %c0_i32, %c0_i32_0 : i32, i32
  }
  func.func @transform_9(%arg0: i32, %arg1: i32) -> (i32, i32) {
    %c0_i32 = arith.constant 0 : i32
    %c0_i32_0 = arith.constant 0 : i32
    %c0_i32_1 = arith.constant 0 : i32
    return %c0_i32, %c0_i32_0 : i32, i32
  }
  func.func @transform_10(%arg0: i32, %arg1: i32) -> (i32, i32) {
    %c0_i32 = arith.constant 0 : i32
    %c0_i32_0 = arith.constant 0 : i32
    %c0_i32_1 = arith.constant 0 : i32
    return %c0_i32, %c0_i32_0 : i32, i32
  }
  func.func @transform_11(%arg0: i32, %arg1: i32) -> (i32, i32) {
    %c0_i32 = arith.constant 0 : i32
    %c0_i32_0 = arith.constant 0 : i32
    %c0_i32_1 = arith.constant 0 : i32
    return %c0_i32, %c0_i32_0 : i32, i32
  }
  func.func @transform_12(%arg0: i32, %arg1: i32) -> (i32, i32) {
    %c0_i32 = arith.constant 0 : i32
    %c0_i32_0 = arith.constant 0 : i32
    return %arg0, %c0_i32 : i32, i32
  }
}

</mosaic_0001>

<llo_original>
// kernel: tpu_custom_call.1
$region0: #{tpu_custom_call.1}
  #allocation0 [shape = 'u32[]', space=smem, size = 0x4, offset = 0x4, fixed_abs, tag = 'smem constant byte address 0x4 - core index']
  #allocation1 [shape = 'u32[72,128]{1,0:T(1,128)}', space=vmem, size = 0x9000, scoped, tag = 'internal scratch']
  #allocation2 [shape = 'f32[8,256]{1,0:T(8,128)}', space=vmem, size = 0x2000, scoped, tag = 'scratch operand']
  %s0 = inlined_call_operand.vmem [shape: f32[8,256], index: 0, kind: input, shape index: {}]
  %s1 = inlined_call_operand.hbm [shape: f32[256,256], index: 1, kind: input, shape index: {}]
  %s2 = inlined_call_operand.vmem [shape: f32[1,128], index: 2, kind: input, shape index: {}]
  %s3 = inlined_call_operand.hbm [shape: f32[128,256], index: 3, kind: input, shape index: {}]
  %s4 = inlined_call_operand.vmem [shape: f32[1,256], index: 4, kind: input, shape index: {}]
  %s5 = inlined_call_operand.hbm [shape: f32[256,128], index: 5, kind: input, shape index: {}]
  %s6 = inlined_call_operand.vmem [shape: f32[1,128], index: 6, kind: input, shape index: {}]
  %s7 = inlined_call_operand.vmem [shape: f32[128,4], index: 7, kind: input, shape index: {}]
  %s8 = inlined_call_operand.vmem [shape: f32[1,4], index: 8, kind: input, shape index: {}]
  %s9 = inlined_call_operand.vmem [shape: f32[1,64], index: 9, kind: input, shape index: {}]
  %s10 = inlined_call_operand.vmem [shape: f32[4,64], index: 10, kind: input, shape index: {}]
  %s11 = inlined_call_operand.vmem [shape: f32[64,128], index: 11, kind: input, shape index: {}]
  %s12 = inlined_call_operand.hbm [shape: f32[8,128], index: 12, kind: output, shape index: {}]
  %s13 = sld [smem:[#allocation0]]
  $region78: #{tpu_custom_call.1} parent=0
    _
  %s15 = ssub.s32 1, %s13
  %s16 = scalar_select 0, %s15, %s13
  $region1: #{tpu_custom_call.1} parent=0
    #allocation3 [shape = 'u8[262144]{0}', space=vmem, size = 0x40000, scoped, tag = 'input window, operand 1, single buffered']
    #allocation4 [shape = 's32[1]{0}', space=sflag, size = 0x4, scoped, tag = 'scoped memory for tpu_custom_call.1']
    #allocation5 [shape = 's32[1]{0}', space=sflag, size = 0x4, scoped, tag = 'scoped memory for tpu_custom_call.1']
    #allocation6 [shape = 'u8[131072]{0}', space=vmem, size = 0x20000, scoped, tag = 'input window, operand 3, single buffered']
    #allocation7 [shape = 's32[1]{0}', space=sflag, size = 0x4, scoped, tag = 'scoped memory for tpu_custom_call.1']
    #allocation8 [shape = 'u8[131072]{0}', space=vmem, size = 0x20000, scoped, tag = 'input window, operand 5, single buffered']
    #allocation9 [shape = 'u8[4096]{0}', space=vmem, size = 0x1000, scoped, tag = 'output window, operand 0, single buffered']
    %17 = vsyncpa [#allocation4], 0
    %18 = vsyncpa [#allocation7], 0
    %19 = vsyncpa [#allocation5], 0
    // Predicated region
    $region2: #{tpu_custom_call.1} parent=1 // pred_check
      _
    $region3: #{tpu_custom_call.1} parent=1 // pred_check_branch
      %21 = sbr.rel (0) target = $region5
    $region4: #{tpu_custom_call.1} parent=1 // pred_region
      _
    $region5: #{tpu_custom_call.1} parent=1 // pred_fallthru
      _
    // Predicated region
    $region6: #{tpu_custom_call.1} parent=1 // pred_check
      _
    $region7: #{tpu_custom_call.1} parent=1 // pred_check_branch
      %23 = sbr.rel (0) target = $region9
    $region8: #{tpu_custom_call.1} parent=1 // pred_region
      %25 = vsyncadd [#allocation4], 0
      %s26 = sshll.u32 %s1, 4
      %s27 = int_to_ptr.hbm [resolvable:$true] %s26
      %s28 = sshll.u32 [#allocation3], 4
      %s29 = int_to_ptr.vmem [resolvable:$true] %s28
      %34 = dma.hbm_to_vmem [thread:$0]  %s27, 8192, %s29, [#allocation4], 256, 256, 16
    $region9: #{tpu_custom_call.1} parent=1 // pred_fallthru
      _
    // Predicated region
    $region10: #{tpu_custom_call.1} parent=1 // pred_check
      _
    $region11: #{tpu_custom_call.1} parent=1 // pred_check_branch
      %36 = sbr.rel (0) target = $region13
    $region12: #{tpu_custom_call.1} parent=1 // pred_region
      _
    $region13: #{tpu_custom_call.1} parent=1 // pred_fallthru
      _
    // Predicated region
    $region14: #{tpu_custom_call.1} parent=1 // pred_check
      _
    $region15: #{tpu_custom_call.1} parent=1 // pred_check_branch
      %38 = sbr.rel (0) target = $region17
    $region16: #{tpu_custom_call.1} parent=1 // pred_region
      %40 = vsyncadd [#allocation7], 0
      %s41 = sshll.u32 %s3, 4
      %s42 = int_to_ptr.hbm [resolvable:$true] %s41
      %s43 = sshll.u32 [#allocation6], 4
      %s44 = int_to_ptr.vmem [resolvable:$true] %s43
      %49 = dma.hbm_to_vmem [thread:$0]  %s42, 4096, %s44, [#allocation7], 256, 256, 16
    $region17: #{tpu_custom_call.1} parent=1 // pred_fallthru
      _
    // Predicated region
    $region18: #{tpu_custom_call.1} parent=1 // pred_check
      _
    $region19: #{tpu_custom_call.1} parent=1 // pred_check_branch
      %51 = sbr.rel (0) target = $region21
    $region20: #{tpu_custom_call.1} parent=1 // pred_region
      _
    $region21: #{tpu_custom_call.1} parent=1 // pred_fallthru
      _
    // Predicated region
    $region22: #{tpu_custom_call.1} parent=1 // pred_check
      _
    $region23: #{tpu_custom_call.1} parent=1 // pred_check_branch
      %53 = sbr.rel (0) target = $region25
    $region24: #{tpu_custom_call.1} parent=1 // pred_region
      %55 = vsyncadd [#allocation7], 0
      %s56 = sshll.u32 %s5, 4
      %s57 = int_to_ptr.hbm [resolvable:$true] %s56
      %s58 = sshll.u32 [#allocation8], 4
      %s59 = int_to_ptr.vmem [resolvable:$true] %s58
      %64 = dma.hbm_to_vmem [thread:$0]  %s57, 4096, %s59, [#allocation7], 128, 128, 8
    $region25: #{tpu_custom_call.1} parent=1 // pred_fallthru
      _
    // Predicated region
    $region26: #{tpu_custom_call.1} parent=1 // pred_check
      _
    $region27: #{tpu_custom_call.1} parent=1 // pred_check_branch
      %66 = sbr.rel (0) target = $region29
    $region28: #{tpu_custom_call.1} parent=1 // pred_region
      _
    $region29: #{tpu_custom_call.1} parent=1 // pred_fallthru
      _
    // Predicated region
    $region30: #{tpu_custom_call.1} parent=1 // pred_check
      _
    $region31: #{tpu_custom_call.1} parent=1 // pred_check_branch
      %68 = sbr.rel (0) target = $region33
    $region32: #{tpu_custom_call.1} parent=1 // pred_region
      _
    $region33: #{tpu_custom_call.1} parent=1 // pred_fallthru
      _
    // Predicated region
    $region34: #{tpu_custom_call.1} parent=1 // pred_check
      _
    $region35: #{tpu_custom_call.1} parent=1 // pred_check_branch
      %70 = sbr.rel (0) target = $region37
    $region36: #{tpu_custom_call.1} parent=1 // pred_region
      _
    $region37: #{tpu_custom_call.1} parent=1 // pred_fallthru
      _
    // Predicated region
    $region38: #{tpu_custom_call.1} parent=1 // pred_check
      _
    $region39: #{tpu_custom_call.1} parent=1 // pred_check_branch
      %72 = sbr.rel (0) target = $region41
    $region40: #{tpu_custom_call.1} parent=1 // pred_region
      _
    $region41: #{tpu_custom_call.1} parent=1 // pred_fallthru
      _
    // Predicated region
    $region42: #{tpu_custom_call.1} parent=1 // pred_check
      _
    $region43: #{tpu_custom_call.1} parent=1 // pred_check_branch
      %74 = sbr.rel (0) target = $region45
    $region44: #{tpu_custom_call.1} parent=1 // pred_region
      _
    $region45: #{tpu_custom_call.1} parent=1 // pred_fallthru
      _
    // Predicated region
    $region46: #{tpu_custom_call.1} parent=1 // pred_check
      _
    $region47: #{tpu_custom_call.1} parent=1 // pred_check_branch
      %76 = sbr.rel (0) target = $region49
    $region48: #{tpu_custom_call.1} parent=1 // pred_region
      _
    $region49: #{tpu_custom_call.1} parent=1 // pred_fallthru
      _
    // Predicated region
    $region50: #{tpu_custom_call.1} parent=1 // pred_check
      _
    $region51: #{tpu_custom_call.1} parent=1 // pred_check_branch
      %78 = sbr.rel (0) target = $region53
    $region52: #{tpu_custom_call.1} parent=1 // pred_region
      %80 = dma.done [#allocation4], 8192
    $region53: #{tpu_custom_call.1} parent=1 // pred_fallthru
      _
    // Predicated region
    $region54: #{tpu_custom_call.1} parent=1 // pred_check
      _
    $region55: #{tpu_custom_call.1} parent=1 // pred_check_branch
      %82 = sbr.rel (0) target = $region57
    $region56: #{tpu_custom_call.1} parent=1 // pred_region
      %84 = dma.done [#allocation7], 4096
    $region57: #{tpu_custom_call.1} parent=1 // pred_fallthru
      _
    // Predicated region
    $region58: #{tpu_custom_call.1} parent=1 // pred_check
      _
    $region59: #{tpu_custom_call.1} parent=1 // pred_check_branch
      %86 = sbr.rel (0) target = $region61
    $region60: #{tpu_custom_call.1} parent=1 // pred_region
      %88 = dma.done [#allocation7], 4096
    $region61: #{tpu_custom_call.1} parent=1 // pred_fallthru
      _
    %p89 = scmp.eq.s32.totalorder 0, 0
    // Predicated region
    $region62: #{tpu_custom_call.1} parent=1 // pred_check
      %p90 = pneg %p89
    $region63: #{tpu_custom_call.1} parent=1 // pred_check_branch
      %92 = sbr.rel (%p90) target = $region65
    $region64: #{tpu_custom_call.1} parent=1 // pred_region
      %93 = vst [vmem:[#allocation2] sm:$0xff] 0.0
      %94 = vst [vmem:[#allocation2 + $0x8] sm:$0xff] 0.0
    $region65: #{tpu_custom_call.1} parent=1 // pred_fallthru
      _
    %v95 = vld [vmem:[#allocation2] sm:$0xff]
    %v96 = vld [vmem:[#allocation2 + $0x8] sm:$0xff]
    %v97 = vld [vmem:[%s0] sm:$0xff]
    %v98 = vld [vmem:[%s0 + $0x8] sm:$0xff]
    %v99 = vld [vmem:[#allocation3] sm:$0xff]
    %v100 = vld [vmem:[#allocation3 + $0x8] sm:$0xff]
    %v101 = vld [vmem:[#allocation3 + $0x10] sm:$0xff]
    %v102 = vld [vmem:[#allocation3 + $0x18] sm:$0xff]
    %v103 = vld [vmem:[#allocation3 + $0x20] sm:$0xff]
    %v104 = vld [vmem:[#allocation3 + $0x28] sm:$0xff]
    %v105 = vld [vmem:[#allocation3 + $0x30] sm:$0xff]
    %v106 = vld [vmem:[#allocation3 + $0x38] sm:$0xff]
    %v107 = vld [vmem:[#allocation3 + $0x40] sm:$0xff]
    %v108 = vld [vmem:[#allocation3 + $0x48] sm:$0xff]
    %v109 = vld [vmem:[#allocation3 + $0x50] sm:$0xff]
    %v110 = vld [vmem:[#allocation3 + $0x58] sm:$0xff]
    %v111 = vld [vmem:[#allocation3 + $0x60] sm:$0xff]
    %v112 = vld [vmem:[#allocation3 + $0x68] sm:$0xff]
    %v113 = vld [vmem:[#allocation3 + $0x70] sm:$0xff]
    %v114 = vld [vmem:[#allocation3 + $0x78] sm:$0xff]
    %v115 = vld [vmem:[#allocation3 + $0x80] sm:$0xff]
    %v116 = vld [vmem:[#allocation3 + $0x88] sm:$0xff]
    %v117 = vld [vmem:[#allocation3 + $0x90] sm:$0xff]
    %v118 = vld [vmem:[#allocation3 + $0x98] sm:$0xff]
    %v119 = vld [vmem:[#allocation3 + $0xa0] sm:$0xff]
    %v120 = vld [vmem:[#allocation3 + $0xa8] sm:$0xff]
    %v121 = vld [vmem:[#allocation3 + $0xb0] sm:$0xff]
    %v122 = vld [vmem:[#allocation3 + $0xb8] sm:$0xff]
    %v123 = vld [vmem:[#allocation3 + $0xc0] sm:$0xff]
    %v124 = vld [vmem:[#allocation3 + $0xc8] sm:$0xff]
    %v125 = vld [vmem:[#allocation3 + $0xd0] sm:$0xff]
    %v126 = vld [vmem:[#allocation3 + $0xd8] sm:$0xff]
    %v127 = vld [vmem:[#allocation3 + $0xe0] sm:$0xff]
    %v128 = vld [vmem:[#allocation3 + $0xe8] sm:$0xff]
    %v129 = vld [vmem:[#allocation3 + $0xf0] sm:$0xff]
    %v130 = vld [vmem:[#allocation3 + $0xf8] sm:$0xff]
    %v131 = vld [vmem:[#allocation3 + $0x100] sm:$0xff]
    %v132 = vld [vmem:[#allocation3 + $0x108] sm:$0xff]
    %v133 = vld [vmem:[#allocation3 + $0x110] sm:$0xff]
    %v134 = vld [vmem:[#allocation3 + $0x118] sm:$0xff]
    %v135 = vld [vmem:[#allocation3 + $0x120] sm:$0xff]
    %v136 = vld [vmem:[#allocation3 + $0x128] sm:$0xff]
    %v137 = vld [vmem:[#allocation3 + $0x130] sm:$0xff]
    %v138 = vld [vmem:[#allocation3 + $0x138] sm:$0xff]
    %v139 = vld [vmem:[#allocation3 + $0x140] sm:$0xff]
    %v140 = vld [vmem:[#allocation3 + $0x148] sm:$0xff]
    %v141 = vld [vmem:[#allocation3 + $0x150] sm:$0xff]
    %v142 = vld [vmem:[#allocation3 + $0x158] sm:$0xff]
    %v143 = vld [vmem:[#allocation3 + $0x160] sm:$0xff]
    %v144 = vld [vmem:[#allocation3 + $0x168] sm:$0xff]
    %v145 = vld [vmem:[#allocation3 + $0x170] sm:$0xff]
    %v146 = vld [vmem:[#allocation3 + $0x178] sm:$0xff]
    %v147 = vld [vmem:[#allocation3 + $0x180] sm:$0xff]
    %v148 = vld [vmem:[#allocation3 + $0x188] sm:$0xff]
    %v149 = vld [vmem:[#allocation3 + $0x190] sm:$0xff]
    %v150 = vld [vmem:[#allocation3 + $0x198] sm:$0xff]
    %v151 = vld [vmem:[#allocation3 + $0x1a0] sm:$0xff]
    %v152 = vld [vmem:[#allocation3 + $0x1a8] sm:$0xff]
    %v153 = vld [vmem:[#allocation3 + $0x1b0] sm:$0xff]
    %v154 = vld [vmem:[#allocation3 + $0x1b8] sm:$0xff]
    %v155 = vld [vmem:[#allocation3 + $0x1c0] sm:$0xff]
    %v156 = vld [vmem:[#allocation3 + $0x1c8] sm:$0xff]
    %v157 = vld [vmem:[#allocation3 + $0x1d0] sm:$0xff]
    %v158 = vld [vmem:[#allocation3 + $0x1d8] sm:$0xff]
    %v159 = vld [vmem:[#allocation3 + $0x1e0] sm:$0xff]
    %v160 = vld [vmem:[#allocation3 + $0x1e8] sm:$0xff]
    %v161 = vld [vmem:[#allocation3 + $0x1f0] sm:$0xff]
    %v162 = vld [vmem:[#allocation3 + $0x1f8] sm:$0xff]
    %163 = vmatpush.msra.mxu0 %v129
    %164 = vmatpush.msra.mxu0 %v127
    %165 = vmatpush.msra.mxu0 %v125
    %166 = vmatpush.msra.mxu0 %v123
    %167 = vmatpush.msra.mxu0 %v121
    %168 = vmatpush.msra.mxu0 %v119
    %169 = vmatpush.msra.mxu0 %v117
    %170 = vmatpush.msra.mxu0 %v115
    %171 = vmatpush.msra.mxu0 %v113
    %172 = vmatpush.msra.mxu0 %v111
    %173 = vmatpush.msra.mxu0 %v109
    %174 = vmatpush.msra.mxu0 %v107
    %175 = vmatpush.msra.mxu0 %v105
    %176 = vmatpush.msra.mxu0 %v103
    %177 = vmatpush.msra.mxu0 %v101
    %178 = vmatpush.msra.mxu0 %v99
    %179 = vmatmul.f32.gmra.mxu0 %v97
    %v180 = vpop.f32.mrf.mxu0
    %v181 = vadd.f32 0.0, %v180
    %182 = vdwg.mxu0
    %183 = vmatpush.msra.mxu0 %v161
    %184 = vmatpush.msra.mxu0 %v159
    %185 = vmatpush.msra.mxu0 %v157
    %186 = vmatpush.msra.mxu0 %v155
    %187 = vmatpush.msra.mxu0 %v153
    %188 = vmatpush.msra.mxu0 %v151
    %189 = vmatpush.msra.mxu0 %v149
    %190 = vmatpush.msra.mxu0 %v147
    %191 = vmatpush.msra.mxu0 %v145
    %192 = vmatpush.msra.mxu0 %v143
    %193 = vmatpush.msra.mxu0 %v141
    %194 = vmatpush.msra.mxu0 %v139
    %195 = vmatpush.msra.mxu0 %v137
    %196 = vmatpush.msra.mxu0 %v135
    %197 = vmatpush.msra.mxu0 %v133
    %198 = vmatpush.msra.mxu0 %v131
    %199 = vmatmul.f32.gmra.mxu0 %v98
    %v200 = vpop.f32.mrf.mxu0
    %v201 = vadd.f32 %v181, %v200
    %202 = vdwg.mxu0
    %203 = vmatpush.msra.mxu0 %v130
    %204 = vmatpush.msra.mxu0 %v128
    %205 = vmatpush.msra.mxu0 %v126
    %206 = vmatpush.msra.mxu0 %v124
    %207 = vmatpush.msra.mxu0 %v122
    %208 = vmatpush.msra.mxu0 %v120
    %209 = vmatpush.msra.mxu0 %v118
    %210 = vmatpush.msra.mxu0 %v116
    %211 = vmatpush.msra.mxu0 %v114
    %212 = vmatpush.msra.mxu0 %v112
    %213 = vmatpush.msra.mxu0 %v110
    %214 = vmatpush.msra.mxu0 %v108
    %215 = vmatpush.msra.mxu0 %v106
    %216 = vmatpush.msra.mxu0 %v104
    %217 = vmatpush.msra.mxu0 %v102
    %218 = vmatpush.msra.mxu0 %v100
    %219 = vmatmul.f32.gmra.mxu0 %v97
    %v220 = vpop.f32.mrf.mxu0
    %v221 = vadd.f32 0.0, %v220
    %222 = vdwg.mxu0
    %223 = vmatpush.msra.mxu0 %v162
    %224 = vmatpush.msra.mxu0 %v160
    %225 = vmatpush.msra.mxu0 %v158
    %226 = vmatpush.msra.mxu0 %v156
    %227 = vmatpush.msra.mxu0 %v154
    %228 = vmatpush.msra.mxu0 %v152
    %229 = vmatpush.msra.mxu0 %v150
    %230 = vmatpush.msra.mxu0 %v148
    %231 = vmatpush.msra.mxu0 %v146
    %232 = vmatpush.msra.mxu0 %v144
    %233 = vmatpush.msra.mxu0 %v142
    %234 = vmatpush.msra.mxu0 %v140
    %235 = vmatpush.msra.mxu0 %v138
    %236 = vmatpush.msra.mxu0 %v136
    %237 = vmatpush.msra.mxu0 %v134
    %238 = vmatpush.msra.mxu0 %v132
    %239 = vmatmul.f32.gmra.mxu0 %v98
    %v240 = vpop.f32.mrf.mxu0
    %v241 = vadd.f32 %v221, %v240
    %242 = vdwg.mxu0
    %v243 = vadd.f32 %v95, %v201
    %v244 = vadd.f32 %v96, %v241
    %245 = vst [vmem:[#allocation2] sm:$0xff] %v243
    %246 = vst [vmem:[#allocation2 + $0x8] sm:$0xff] %v244
    // Predicated region
    $region66: #{tpu_custom_call.1} parent=1 // pred_check
      %p247 = pneg %p89
    $region67: #{tpu_custom_call.1} parent=1 // pred_check_branch
      %249 = sbr.rel (%p247) target = $region69
    $region68: #{tpu_custom_call.1} parent=1 // pred_region
      %v250 = vld [vmem:[#allocation2] sm:$0xff]
      %v251 = vld [vmem:[#allocation2 + $0x8] sm:$0xff]
      %v252 = vld [vmem:[%s2] sm:$0x1]
      %v254 = vperm.slane %v252, 0
      %v256 = vadd.f32 %v250, %v254
      %v257 = vmax.f32 %v256, 0.0
      %v258 = vld [vmem:[#allocation6] sm:$0xff]
      %v259 = vld [vmem:[#allocation6 + $0x8] sm:$0xff]
      %v260 = vld [vmem:[#allocation6 + $0x10] sm:$0xff]
      %v261 = vld [vmem:[#allocation6 + $0x18] sm:$0xff]
      %v262 = vld [vmem:[#allocation6 + $0x20] sm:$0xff]
      %v263 = vld [vmem:[#allocation6 + $0x28] sm:$0xff]
      %v264 = vld [vmem:[#allocation6 + $0x30] sm:$0xff]
      %v265 = vld [vmem:[#allocation6 + $0x38] sm:$0xff]
      %v266 = vld [vmem:[#allocation6 + $0x40] sm:$0xff]
      %v267 = vld [vmem:[#allocation6 + $0x48] sm:$0xff]
      %v268 = vld [vmem:[#allocation6 + $0x50] sm:$0xff]
      %v269 = vld [vmem:[#allocation6 + $0x58] sm:$0xff]
      %v270 = vld [vmem:[#allocation6 + $0x60] sm:$0xff]
      %v271 = vld [vmem:[#allocation6 + $0x68] sm:$0xff]
      %v272 = vld [vmem:[#allocation6 + $0x70] sm:$0xff]
      %v273 = vld [vmem:[#allocation6 + $0x78] sm:$0xff]
      %v274 = vld [vmem:[#allocation6 + $0x80] sm:$0xff]
      %v275 = vld [vmem:[#allocation6 + $0x88] sm:$0xff]
      %v276 = vld [vmem:[#allocation6 + $0x90] sm:$0xff]
      %v277 = vld [vmem:[#allocation6 + $0x98] sm:$0xff]
      %v278 = vld [vmem:[#allocation6 + $0xa0] sm:$0xff]
      %v279 = vld [vmem:[#allocation6 + $0xa8] sm:$0xff]
      %v280 = vld [vmem:[#allocation6 + $0xb0] sm:$0xff]
      %v281 = vld [vmem:[#allocation6 + $0xb8] sm:$0xff]
      %v282 = vld [vmem:[#allocation6 + $0xc0] sm:$0xff]
      %v283 = vld [vmem:[#allocation6 + $0xc8] sm:$0xff]
      %v284 = vld [vmem:[#allocation6 + $0xd0] sm:$0xff]
      %v285 = vld [vmem:[#allocation6 + $0xd8] sm:$0xff]
      %v286 = vld [vmem:[#allocation6 + $0xe0] sm:$0xff]
      %v287 = vld [vmem:[#allocation6 + $0xe8] sm:$0xff]
      %v288 = vld [vmem:[#allocation6 + $0xf0] sm:$0xff]
      %v289 = vld [vmem:[#allocation6 + $0xf8] sm:$0xff]
      %v290 = vld [vmem:[%s4] sm:$0x3]
      %v292 = vperm.slane %v290, 0
      %v293 = vperm.slane %v290, 1
      %296 = vmatpush.msra.mxu0 %v288
      %297 = vmatpush.msra.mxu0 %v286
      %298 = vmatpush.msra.mxu0 %v284
      %299 = vmatpush.msra.mxu0 %v282
      %300 = vmatpush.msra.mxu0 %v280
      %301 = vmatpush.msra.mxu0 %v278
      %302 = vmatpush.msra.mxu0 %v276
      %303 = vmatpush.msra.mxu0 %v274
      %304 = vmatpush.msra.mxu0 %v272
      %305 = vmatpush.msra.mxu0 %v270
      %306 = vmatpush.msra.mxu0 %v268
      %307 = vmatpush.msra.mxu0 %v266
      %308 = vmatpush.msra.mxu0 %v264
      %309 = vmatpush.msra.mxu0 %v262
      %310 = vmatpush.msra.mxu0 %v260
      %311 = vmatpush.msra.mxu0 %v258
      %312 = vmatmul.f32.gmra.mxu0 %v257
      %v313 = vpop.f32.mrf.mxu0
      %v314 = vadd.f32 %v292, %v313
      %315 = vdwg.mxu0
      %316 = vmatpush.msra.mxu0 %v289
      %317 = vmatpush.msra.mxu0 %v287
      %318 = vmatpush.msra.mxu0 %v285
      %319 = vmatpush.msra.mxu0 %v283
      %320 = vmatpush.msra.mxu0 %v281
      %321 = vmatpush.msra.mxu0 %v279
      %322 = vmatpush.msra.mxu0 %v277
      %323 = vmatpush.msra.mxu0 %v275
      %324 = vmatpush.msra.mxu0 %v273
      %325 = vmatpush.msra.mxu0 %v271
      %326 = vmatpush.msra.mxu0 %v269
      %327 = vmatpush.msra.mxu0 %v267
      %328 = vmatpush.msra.mxu0 %v265
      %329 = vmatpush.msra.mxu0 %v263
      %330 = vmatpush.msra.mxu0 %v261
      %331 = vmatpush.msra.mxu0 %v259
      %332 = vmatmul.f32.gmra.mxu0 %v257
      %v333 = vpop.f32.mrf.mxu0
      %v334 = vadd.f32 %v293, %v333
      %335 = vdwg.mxu0
      %vm336 = vcmp.gt.f32.partialorder %v314, 0.0
      %vm337 = vcmp.gt.f32.partialorder %v334, 0.0
      %v338 = vmul.f32 %v314, 0.01
      %v339 = vmul.f32 %v334, 0.01
      %v340 = vsel %vm336, %v314, %v338
      %v341 = vsel %vm337, %v334, %v339
      %v342 = vld [vmem:[#allocation8] sm:$0xff]
      %v343 = vld [vmem:[#allocation8 + $0x8] sm:$0xff]
      %v344 = vld [vmem:[#allocation8 + $0x10] sm:$0xff]
      %v345 = vld [vmem:[#allocation8 + $0x18] sm:$0xff]
      %v346 = vld [vmem:[#allocation8 + $0x20] sm:$0xff]
      %v347 = vld [vmem:[#allocation8 + $0x28] sm:$0xff]
      %v348 = vld [vmem:[#allocation8 + $0x30] sm:$0xff]
      %v349 = vld [vmem:[#allocation8 + $0x38] sm:$0xff]
      %v350 = vld [vmem:[#allocation8 + $0x40] sm:$0xff]
      %v351 = vld [vmem:[#allocation8 + $0x48] sm:$0xff]
      %v352 = vld [vmem:[#allocation8 + $0x50] sm:$0xff]
      %v353 = vld [vmem:[#allocation8 + $0x58] sm:$0xff]
      %v354 = vld [vmem:[#allocation8 + $0x60] sm:$0xff]
      %v355 = vld [vmem:[#allocation8 + $0x68] sm:$0xff]
      %v356 = vld [vmem:[#allocation8 + $0x70] sm:$0xff]
      %v357 = vld [vmem:[#allocation8 + $0x78] sm:$0xff]
      %v358 = vld [vmem:[#allocation8 + $0x80] sm:$0xff]
      %v359 = vld [vmem:[#allocation8 + $0x88] sm:$0xff]
      %v360 = vld [vmem:[#allocation8 + $0x90] sm:$0xff]
      %v361 = vld [vmem:[#allocation8 + $0x98] sm:$0xff]
      %v362 = vld [vmem:[#allocation8 + $0xa0] sm:$0xff]
      %v363 = vld [vmem:[#allocation8 + $0xa8] sm:$0xff]
      %v364 = vld [vmem:[#allocation8 + $0xb0] sm:$0xff]
      %v365 = vld [vmem:[#allocation8 + $0xb8] sm:$0xff]
      %v366 = vld [vmem:[#allocation8 + $0xc0] sm:$0xff]
      %v367 = vld [vmem:[#allocation8 + $0xc8] sm:$0xff]
      %v368 = vld [vmem:[#allocation8 + $0xd0] sm:$0xff]
      %v369 = vld [vmem:[#allocation8 + $0xd8] sm:$0xff]
      %v370 = vld [vmem:[#allocation8 + $0xe0] sm:$0xff]
      %v371 = vld [vmem:[#allocation8 + $0xe8] sm:$0xff]
      %v372 = vld [vmem:[#allocation8 + $0xf0] sm:$0xff]
      %v373 = vld [vmem:[#allocation8 + $0xf8] sm:$0xff]
      %v374 = vld [vmem:[%s6] sm:$0x1]
      %v376 = vperm.slane %v374, 0
      %378 = vmatpush.msra.mxu0 %v357
      %379 = vmatpush.msra.mxu0 %v356
      %380 = vmatpush.msra.mxu0 %v355
      %381 = vmatpush.msra.mxu0 %v354
      %382 = vmatpush.msra.mxu0 %v353
      %383 = vmatpush.msra.mxu0 %v352
      %384 = vmatpush.msra.mxu0 %v351
      %385 = vmatpush.msra.mxu0 %v350
      %386 = vmatpush.msra.mxu0 %v349
      %387 = vmatpush.msra.mxu0 %v348
      %388 = vmatpush.msra.mxu0 %v347
      %389 = vmatpush.msra.mxu0 %v346
      %390 = vmatpush.msra.mxu0 %v345
      %391 = vmatpush.msra.mxu0 %v344
      %392 = vmatpush.msra.mxu0 %v343
      %393 = vmatpush.msra.mxu0 %v342
      %394 = vmatmul.f32.gmra.mxu0 %v340
      %v395 = vpop.f32.mrf.mxu0
      %v396 = vadd.f32 %v376, %v395
      %397 = vdwg.mxu0
      %398 = vmatpush.msra.mxu0 %v373
      %399 = vmatpush.msra.mxu0 %v372
      %400 = vmatpush.msra.mxu0 %v371
      %401 = vmatpush.msra.mxu0 %v370
      %402 = vmatpush.msra.mxu0 %v369
      %403 = vmatpush.msra.mxu0 %v368
      %404 = vmatpush.msra.mxu0 %v367
      %405 = vmatpush.msra.mxu0 %v366
      %406 = vmatpush.msra.mxu0 %v365
      %407 = vmatpush.msra.mxu0 %v364
      %408 = vmatpush.msra.mxu0 %v363
      %409 = vmatpush.msra.mxu0 %v362
      %410 = vmatpush.msra.mxu0 %v361
      %411 = vmatpush.msra.mxu0 %v360
      %412 = vmatpush.msra.mxu0 %v359
      %413 = vmatpush.msra.mxu0 %v358
      %414 = vmatmul.f32.gmra.mxu0 %v341
      %v415 = vpop.f32.mrf.mxu0
      %v416 = vadd.f32 %v396, %v415
      %417 = vdwg.mxu0
      %vm418 = vcmp.gt.f32.partialorder %v416, 0.0
      %v419 = vmul.f32 %v416, 0.01
      %v420 = vsel %vm418, %v416, %v419
      %v421 = vld [vmem:[%s7] sm:$0xff]
      %v422 = vld [vmem:[%s7 + $0x8] sm:$0xff]
      %v423 = vld [vmem:[%s7 + $0x10] sm:$0xff]
      %v424 = vld [vmem:[%s7 + $0x18] sm:$0xff]
      %v425 = vld [vmem:[%s7 + $0x20] sm:$0xff]
      %v426 = vld [vmem:[%s7 + $0x28] sm:$0xff]
      %v427 = vld [vmem:[%s7 + $0x30] sm:$0xff]
      %v428 = vld [vmem:[%s7 + $0x38] sm:$0xff]
      %v429 = vld [vmem:[%s7 + $0x40] sm:$0xff]
      %v430 = vld [vmem:[%s7 + $0x48] sm:$0xff]
      %v431 = vld [vmem:[%s7 + $0x50] sm:$0xff]
      %v432 = vld [vmem:[%s7 + $0x58] sm:$0xff]
      %v433 = vld [vmem:[%s7 + $0x60] sm:$0xff]
      %v434 = vld [vmem:[%s7 + $0x68] sm:$0xff]
      %v435 = vld [vmem:[%s7 + $0x70] sm:$0xff]
      %v436 = vld [vmem:[%s7 + $0x78] sm:$0xff]
      %v437 = vld [vmem:[%s8] sm:$0x1]
      %v439 = vperm.slane %v437, 0
      %441 = vmatpush.msra.mxu0 %v436
      %442 = vmatpush.msra.mxu0 %v435
      %443 = vmatpush.msra.mxu0 %v434
      %444 = vmatpush.msra.mxu0 %v433
      %445 = vmatpush.msra.mxu0 %v432
      %446 = vmatpush.msra.mxu0 %v431
      %447 = vmatpush.msra.mxu0 %v430
      %448 = vmatpush.msra.mxu0 %v429
      %449 = vmatpush.msra.mxu0 %v428
      %450 = vmatpush.msra.mxu0 %v427
      %451 = vmatpush.msra.mxu0 %v426
      %452 = vmatpush.msra.mxu0 %v425
      %453 = vmatpush.msra.mxu0 %v424
      %454 = vmatpush.msra.mxu0 %v423
      %455 = vmatpush.msra.mxu0 %v422
      %456 = vmatpush.msra.mxu0 %v421
      %457 = vmatmul.f32.gmra.mxu0 %v420
      %v458 = vpop.f32.mrf.mxu0
      %v459 = vadd.f32 %v439, %v458
      %460 = vdwg.mxu0
      %vm461 = vcmask 31744
      %v462 = vsel %vm461, %v459, -inf
      %463 = vmax.xlane.f32.xlu0 %v462
      %v464 = vpop.xlane.xlu0 %463
      %v465 = vsub.f32 %v459, %v464
      %v466 = vmul.f32 %v465, 1.442695
      %v467 = vpow.pop %v466
      %v468 = vsel %vm461, %v467, 0.0
      %469 = vadd.xlane.f32.xlu0 %v468
      %v470 = vpop.xlane.xlu0 %469
      %v471 = vrcp.pop %v470
      %v472 = vmul.f32 %v470, %v471
      %v473 = vsub.f32 1.0, %v472
      %v474 = vmul.f32 %v471, %v473
      %v475 = vadd.f32 %v471, %v474
      %vm476 = vweird.f32 %v470
      %vm477 = vweird.f32 %v471
      %vm478 = vmor %vm476, %vm477
      %v479 = vsel %vm478, %v471, %v475
      %v480 = vand.u32 2147483647, %v470
      %vm481 = vcmp.eq.f32.partialorder %v480, 8.507059e+37
      %v482 = vand.u32 %v470, 2147483648
      %v483 = vor.u32 1.1754944e-38, %v482
      %v484 = vsel %vm481, %v483, %v479
      %v485 = vmul.f32 %v467, %v484
      %v486 = vld [vmem:[%s10] sm:$0xf]
      %v488 = vsel %vm461, %v485, 0
      %vm490 = vcmask 1043456
      %v492 = vsel %vm490, %v486, 0
      %494 = vmatpush.msra.mxu0 0.0
      %495 = vmatpush.msra.mxu0 0.0
      %496 = vmatpush.msra.mxu0 0.0
      %497 = vmatpush.msra.mxu0 0.0
      %498 = vmatpush.msra.mxu0 0.0
      %499 = vmatpush.msra.mxu0 0.0
      %500 = vmatpush.msra.mxu0 0.0
      %501 = vmatpush.msra.mxu0 0.0
      %502 = vmatpush.msra.mxu0 0.0
      %503 = vmatpush.msra.mxu0 0.0
      %504 = vmatpush.msra.mxu0 0.0
      %505 = vmatpush.msra.mxu0 0.0
      %506 = vmatpush.msra.mxu0 0.0
      %507 = vmatpush.msra.mxu0 0.0
      %508 = vmatpush.msra.mxu0 0.0
      %509 = vmatpush.msra.mxu0 %v492
      %510 = vmatmul.f32.gmra.mxu0 %v488
      %v511 = vpop.f32.mrf.mxu0
      %v512 = vadd.f32 0.0, %v511
      %513 = vdwg.mxu0
      %v514 = vld [vmem:[%s9] sm:$0x1]
      %v516 = vperm.slane %v514, 0
      %v518 = vadd.f32 %v251, %v516
      %v519 = vmul.f32 %v518, %v512
      %v520 = vld [vmem:[%s11] sm:$0xff]
      %v521 = vld [vmem:[%s11 + $0x8] sm:$0xff]
      %v522 = vld [vmem:[%s11 + $0x10] sm:$0xff]
      %v523 = vld [vmem:[%s11 + $0x18] sm:$0xff]
      %v524 = vld [vmem:[%s11 + $0x20] sm:$0xff]
      %v525 = vld [vmem:[%s11 + $0x28] sm:$0xff]
      %v526 = vld [vmem:[%s11 + $0x30] sm:$0xff]
      %v527 = vld [vmem:[%s11 + $0x38] sm:$0xff]
      %vm528 = vcmask 523264
      %v530 = vsel %vm528, %v519, 0
      %532 = vmatpush.msra.mxu0 0.0
      %533 = vmatpush.msra.mxu0 0.0
      %534 = vmatpush.msra.mxu0 0.0
      %535 = vmatpush.msra.mxu0 0.0
      %536 = vmatpush.msra.mxu0 0.0
      %537 = vmatpush.msra.mxu0 0.0
      %538 = vmatpush.msra.mxu0 0.0
      %539 = vmatpush.msra.mxu0 0.0
      %540 = vmatpush.msra.mxu0 %v527
      %541 = vmatpush.msra.mxu0 %v526
      %542 = vmatpush.msra.mxu0 %v525
      %543 = vmatpush.msra.mxu0 %v524
      %544 = vmatpush.msra.mxu0 %v523
      %545 = vmatpush.msra.mxu0 %v522
      %546 = vmatpush.msra.mxu0 %v521
      %547 = vmatpush.msra.mxu0 %v520
      %548 = vmatmul.f32.gmra.mxu0 %v530
      %v549 = vpop.f32.mrf.mxu0
      %v550 = vadd.f32 0.0, %v549
      %551 = vdwg.mxu0
      %552 = vst [vmem:[#allocation9] sm:$0xff] %v550
    $region69: #{tpu_custom_call.1} parent=1 // pred_fallthru
      _
    // Predicated region
    $region70: #{tpu_custom_call.1} parent=1 // pred_check
      _
    $region71: #{tpu_custom_call.1} parent=1 // pred_check_branch
      %554 = sbr.rel (0) target = $region73
    $region72: #{tpu_custom_call.1} parent=1 // pred_region
      %556 = vsyncadd [#allocation5], 0
      %s558 = sshll.u32 [#allocation9], 4
      %s559 = int_to_ptr.vmem [resolvable:$true] %s558
      %s560 = sshll.u32 %s12, 4
      %s561 = int_to_ptr.hbm [resolvable:$true] %s560
      %563 = dma.vmem_to_hbm [thread:$0]  %s559, 128, %s561, [#allocation5]
    $region73: #{tpu_custom_call.1} parent=1 // pred_fallthru
      _
    // Predicated region
    $region74: #{tpu_custom_call.1} parent=1 // pred_check
      _
    $region75: #{tpu_custom_call.1} parent=1 // pred_check_branch
      %565 = sbr.rel (0) target = $region77
    $region76: #{tpu_custom_call.1} parent=1 // pred_region
      %567 = dma.done [#allocation5], 128
    $region77: #{tpu_custom_call.1} parent=1 // pred_fallthru
      _
    %568 = vsyncpa [#allocation4], 1
    %569 = vsyncpa [#allocation7], 1
    %570 = vsyncpa [#allocation5], 1

</llo_original>
